<compile_context>
chip_gen: v7x
topology: tpu7x:2x2x1
jax: 0.10.0
libtpu: 0.0.40
codegen_flags: <defaults>
</compile_context>

<pallas_src>
import math

import jax
import jax.numpy as jnp
from jax import lax
from jax.experimental import pallas as pl
from jax.experimental.pallas import tpu as pltpu

_LANES = 128
_BLOCK_BYTES = 2 * 1024 * 1024   # ~2 MiB/block: ~85% of HBM roofline; input+output
                                 # double-buffered (4x) fits 16/32/32 MiB default
                                 # scoped VMEM on v5e/v6e/v7x.
_VMEM_LIMIT = 32 * 1024 * 1024   # explicit headroom (safe on all generations).


def _reverse_copy_kernel(x_ref, o_ref):
    # Pure copy: the axis-0 reversal is done entirely by the input index_map.
    o_ref[...] = x_ref[...]


def _factor_trailing(rest: int) -> tuple[int, int]:
    """Split `rest` into (sublanes S, lanes L) with S*L == rest, no padding."""
    if rest % _LANES != 0:
        return 1, rest                   # full-dim lane block (no padding needed)
    S, L = rest // _LANES, _LANES
    # Widen the lane dim (lane-dense, unmasked stores; fewer rows per block)
    # while the sublane count stays a multiple of the vreg height (8).
    while L < 2048 and S % 2 == 0 and (S // 2) % 8 == 0:
        S //= 2
        L *= 2
    return S, L


def _rows_per_block(S: int, L: int, itemsize: int) -> int:
    """Sublane rows per block: as large as possible under the byte budget."""
    max_rows = max(1, _BLOCK_BYTES // (L * itemsize))
    if S <= max_rows:
        return S
    packed = max(1, 4 // itemsize)       # sub-32-bit dtypes pack along sublanes
    for gran in (8 * packed, 8):         # prefer packed-vreg-aligned row counts
        best = 0
        d = gran
        while d <= max_rows:
            if S % d == 0:
                best = d
            d += gran
        if best:
            return best
    return S                             # rare fallback; relies on vmem headroom


def _reverse_axis0(x: jax.Array) -> jax.Array:
    """signal[::-1] along axis 0, as a Pallas TPU kernel (bit-exact copy)."""
    orig_shape = x.shape
    B = orig_shape[0]
    rest = math.prod(orig_shape[1:]) if x.ndim > 1 else 1
    # TODO(synk): add a lane-reversal fast path for 1-D signals (rest == 1);
    # the generic path below is correct but degenerates to tiny blocks there.

    S, L = _factor_trailing(rest)
    ts = _rows_per_block(S, L, x.dtype.itemsize)
    nr = S // ts

    x3 = x.reshape(B, S, L)

    out3 = pl.pallas_call(
        _reverse_copy_kernel,
        out_shape=jax.ShapeDtypeStruct((B, S, L), x.dtype),
        grid=(B, nr),
        in_specs=[
            # Output block (b, r) is fed from input block (B-1-b, r).
            pl.BlockSpec((1, ts, L), lambda b, r: (B - 1 - b, r, 0)),
        ],
        out_specs=pl.BlockSpec((1, ts, L), lambda b, r: (b, r, 0)),
        compiler_params=pltpu.CompilerParams(
            # Every grid point owns a distinct output block -> fully parallel.
            # (On v7x, CORE_PARALLEL on the leading axis would shard the copy
            #  across both TensorCores; "parallel" is the portable choice.)
            dimension_semantics=("parallel", "parallel"),
            vmem_limit_bytes=_VMEM_LIMIT,
        ),
    )(x3)

    return out3.reshape(orig_shape)


def random_reverse(signal: jax.Array, *, p: float = 0.5, key=None) -> jax.Array:
    """Pallas implementation of RandomReverse.forward.

    With probability p (decided deterministically from `key`), returns
    signal reversed along axis 0 (== signal[::-1]); otherwise returns the
    signal unchanged.
    """
    if key is None:
        key = jax.random.PRNGKey(0)

    # Static short-circuits: never / always reverse.
    if p <= 0.0:
        return signal
    if p >= 1.0:
        return _reverse_axis0(signal)

    # TakeDice(p): deterministic Bernoulli from the PRNG key (replaces
    # Python's random.random()).  lax.cond skips the kernel entirely on the
    # passthrough branch, so no HBM read+write is spent on a no-op.
    dice = jax.random.uniform(key, (), dtype=jnp.float32) < p
    return lax.cond(dice, _reverse_axis0, lambda s: s, signal)


if __name__ == "__main__":
    key = jax.random.PRNGKey(0)
    k_data, k_dice = jax.random.split(key)

    # Small NCHW-style signal (batch=2, channels=4, spatial=16x16).
    x = jax.random.normal(k_data, (2, 4, 16, 16), dtype=jnp.float32)

    # Reverse branch forced on: must equal flip along axis 0 (bit-exact).
    out_rev = jax.block_until_ready(random_reverse(x, p=1.0, key=k_dice))
    assert out_rev.shape == x.shape and out_rev.dtype == x.dtype
    assert bool(jnp.array_equal(out_rev, jnp.flip(x, axis=0))), "reverse mismatch"

    # Reverse branch forced off: identity.
    out_id = jax.block_until_ready(random_reverse(x, p=0.0, key=k_dice))
    assert bool(jnp.array_equal(out_id, x)), "identity mismatch"

    # Probabilistic path (p=0.5): matches whichever branch the dice picks.
    out = jax.block_until_ready(random_reverse(x, p=0.5, key=k_dice))
    dice = bool(jax.random.uniform(k_dice, (), dtype=jnp.float32) < 0.5)
    ref = jnp.flip(x, axis=0) if dice else x
    assert bool(jnp.array_equal(out, ref)), "mismatch vs reference"

    print("KERNEL_OK")
</pallas_src>

<mosaic_0001>
module attributes {stable_mosaic.version = 11 : i64} {
  func.func @_reverse_copy_kernel(%arg0: i32, %arg1: i32, %arg2: memref<1x8x128xf32, #tpu.memory_space<vmem>>, %arg3: memref<1x8x128xf32, #tpu.memory_space<vmem>>) attributes {dimension_semantics = [#tpu.dimension_semantics<parallel>, #tpu.dimension_semantics<parallel>], iteration_bounds = array<i64: 2, 1>, scalar_prefetch = 0 : i64, scratch_operands = 0 : i64, tpu.core_type = #tpu.core_type<tc>, window_params = [{transform_indices = @transform_0, window_bounds = array<i64: 1, 8, 128>}, {transform_indices = @transform_1, window_bounds = array<i64: 1, 8, 128>}]} {
    %c0 = arith.constant 0 : index
    %c0_0 = arith.constant 0 : index
    %c0_1 = arith.constant 0 : index
    %0 = vector.load %arg2[%c0, %c0_0, %c0_1] : memref<1x8x128xf32, #tpu.memory_space<vmem>>, vector<1x8x128xf32>
    %c0_2 = arith.constant 0 : index
    %c0_3 = arith.constant 0 : index
    %c0_4 = arith.constant 0 : index
    %1 = vector.load %arg3[%c0_2, %c0_3, %c0_4] : memref<1x8x128xf32, #tpu.memory_space<vmem>>, vector<1x8x128xf32>
    tpu.vector_store %arg3[%c0_2, %c0_3, %c0_4], %0 {strides = array<i32>} : memref<1x8x128xf32, #tpu.memory_space<vmem>>, vector<1x8x128xf32>,
    return
  }
  func.func @transform_0(%arg0: i32, %arg1: i32) -> (i32, i32, i32) {
    %c1_i32 = arith.constant 1 : i32
    %0 = arith.subi %c1_i32, %arg0 : i32
    %c0_i32 = arith.constant 0 : i32
    %c0_i32_0 = arith.constant 0 : i32
    return %0, %arg1, %c0_i32 : i32, i32, i32
  }
  func.func @transform_1(%arg0: i32, %arg1: i32) -> (i32, i32, i32) {
    %c0_i32 = arith.constant 0 : i32
    %c0_i32_0 = arith.constant 0 : i32
    return %arg0, %arg1, %c0_i32 : i32, i32, i32
  }
}

</mosaic_0001>

<llo_original>
// kernel: tpu_custom_call.1
$region0: #{tpu_custom_call.1}
  #allocation0 [shape = 'u32[]', space=smem, size = 0x4, offset = 0x4, fixed_abs, tag = 'smem constant byte address 0x4 - core index']
  #allocation1 [shape = 'u32[144,128]{1,0:T(1,128)}', space=vmem, size = 0x12000, scoped, tag = 'internal scratch']
  %s0 = inlined_call_operand.hbm [shape: f32[2,8,128], index: 0, kind: input, shape index: {}]
  %s1 = inlined_call_operand.hbm [shape: f32[2,8,128], index: 1, kind: output, shape index: {}]
  %s2 = sld [smem:[#allocation0]]
  $region41: #{tpu_custom_call.1} parent=0
    _
  %s4 = ssub.s32 1, %s2
  %s5 = scalar_select 0, %s4, %s2
  $region1: #{tpu_custom_call.1} parent=0
    #allocation2 [shape = 'u8[8192]{0}', space=vmem, size = 0x2000, scoped, tag = 'input window, operand 0']
    #allocation3 [shape = 's32[2]{0}', space=sflag, size = 0x8, scoped, tag = 'scoped memory for tpu_custom_call.1']
    #allocation4 [shape = 's32[2]{0}', space=sflag, size = 0x8, scoped, tag = 'scoped memory for tpu_custom_call.1']
    #allocation5 [shape = 'u8[8192]{0}', space=vmem, size = 0x2000, scoped, tag = 'output window, operand 0']
    %6 = vsyncpa [#allocation3], 0
    %s7 = scalar_lea.sflag [#allocation3], 1
    %8 = vsyncpa %s7, 0
    %9 = vsyncpa [#allocation4], 0
    %s10 = scalar_lea.sflag [#allocation4], 1
    %11 = vsyncpa %s10, 0
    loop: start=0, step=1, limit=4
    $region2: #{tpu_custom_call.1} parent=1 // loop_pre_header
      _
    $region3: #{tpu_custom_call.1} parent=1 // loop_header
      %s13 = sphi 0, %s17
      %p14 = scmp.ge.s32.totalorder %s13, 4
      %s20 = sphi 0, %s32
      %s21 = sphi 0, %s28
      %s22 = sphi 0, %s20
      %s23 = sphi 0, %s21
      %s24 = sphi 0, %s22
      %s25 = sphi 0, %s23
      %s39 = sphi 0, %s41
      %s42 = sphi 0, %s39
      %s43 = sphi 0, %s42
      %s59 = sphi 0, %s43
      %s67 = sphi 0, %s69
      %s70 = sphi 0, %s67
      %s71 = sphi 0, %s70
      %s87 = sphi 0, %s71
    $region4: #{tpu_custom_call.1} parent=1 // loop_header_branch
      %16 = sbr.rel (%p14) target = $region8
    $region5: #{tpu_custom_call.1} parent=1 // loop_body
      %s18 = ssub.s32 %s13, 1
      %s19 = ssub.s32 %s13, 2
      %s26 = sadd.s32 1, %s21
      %p27 = scmp.ge.s32.totalorder %s26, 1
      %s28 = scalar_select %p27, 0, %s26
      %s29 = sadd.s32 1, %s20
      %s30 = scalar_select %p27, %s29, %s20
      %p31 = scmp.ge.s32.totalorder %s30, 2
      %s32 = scalar_select %p31, 0, %s30
      %s33 = ssub.s32 1, %s20
      %s34 = ssub.s32 1, %s32
      %s35 = ssub.s32 %s33, %s34
      %s36 = ssub.s32 %s21, %s28
      %s37 = sor.u32 %s35, %s36
      %p38 = scmp.eq.s32.totalorder %s37, 0
      %s40 = sadd.s32 %s39, 1
      %s41 = scalar_select %p38, %s39, %s40
      %p44 = pneg %p38
      %p45 = scmp.eq.s32.totalorder %s13, 1
      %p46 = por %p44, %p45
      %p47 = scmp.ne.s32.totalorder %s39, %s42
      %p48 = scmp.eq.s32.totalorder %s13, 0
      %p49 = por %p47, %p48
      %p50 = scmp.ne.s32.totalorder %s39, %s42
      %p51 = scmp.eq.s32.totalorder %s18, 1
      %p52 = por %p50, %p51
      %p53 = scmp.ne.s32.totalorder %s42, %s43
      %p54 = scmp.eq.s32.totalorder %s18, 0
      %p55 = por %p53, %p54
      %p56 = scmp.ne.s32.totalorder %s42, %s43
      %p57 = scmp.eq.s32.totalorder %s19, 1
      %p58 = por %p56, %p57
      %p60 = scmp.ne.s32.totalorder %s43, %s59
      %p61 = scmp.eq.s32.totalorder %s19, 0
      %p62 = por %p60, %p61
      %s63 = ssub.s32 %s20, %s32
      %s64 = ssub.s32 %s21, %s28
      %s65 = sor.u32 %s63, %s64
      %p66 = scmp.eq.s32.totalorder %s65, 0
      %s68 = sadd.s32 %s67, 1
      %s69 = scalar_select %p66, %s67, %s68
      %p72 = pneg %p66
      %p73 = scmp.eq.s32.totalorder %s13, 1
      %p74 = por %p72, %p73
      %p75 = scmp.ne.s32.totalorder %s67, %s70
      %p76 = scmp.eq.s32.totalorder %s13, 0
      %p77 = por %p75, %p76
      %p78 = scmp.ne.s32.totalorder %s67, %s70
      %p79 = scmp.eq.s32.totalorder %s18, 1
      %p80 = por %p78, %p79
      %p81 = scmp.ne.s32.totalorder %s70, %s71
      %p82 = scmp.eq.s32.totalorder %s18, 0
      %p83 = por %p81, %p82
      %p84 = scmp.ne.s32.totalorder %s70, %s71
      %p85 = scmp.eq.s32.totalorder %s19, 1
      %p86 = por %p84, %p85
      %p88 = scmp.ne.s32.totalorder %s71, %s87
      %p89 = scmp.eq.s32.totalorder %s19, 0
      %p90 = por %p88, %p89
      %p91 = scmp.le.s32.totalorder 1, %s13
      %p92 = scmp.lt.s32.totalorder %s13, 3
      %p93 = pnand %p91, %p92
      %p94 = pneg %p93
      // Predicated region
      $region9: #{tpu_custom_call.1} parent=5 // pred_check
        _
      $region10: #{tpu_custom_call.1} parent=5 // pred_check_branch
        %96 = sbr.rel (%p93) target = $region12
      $region11: #{tpu_custom_call.1} parent=5 // pred_region
        %s97 = ssub.s32 %s13, 1
      $region12: #{tpu_custom_call.1} parent=5 // pred_fallthru
        _
      %p98 = scmp.lt.s32.totalorder %s13, 2
      // Predicated region
      $region13: #{tpu_custom_call.1} parent=5 // pred_check
        %p99 = pneg %p98
      $region14: #{tpu_custom_call.1} parent=5 // pred_check_branch
        %101 = sbr.rel (%p99) target = $region16
      $region15: #{tpu_custom_call.1} parent=5 // pred_region
        // Predicated region
        $region17: #{tpu_custom_call.1} parent=15 // pred_check
          %p102 = pneg %p49
        $region18: #{tpu_custom_call.1} parent=15 // pred_check_branch
          %104 = sbr.rel (%p102) target = $region20
        $region19: #{tpu_custom_call.1} parent=15 // pred_region
          %s105 = sand.u32 %s39, 1
          %s106 = scalar_lea.sflag [#allocation3], %s105
          %s107 = sand.u32 %s39, 1
          %s108 = smul.addr %s107, 8
          %s109 = scalar_lea.vmem [#allocation2], %s108
          %s110 = ssub.s32 1, %s20
          %s112 = ssub.s32 128, 128
          %113 = vsyncadd %s106, %s112
          %s114 = sadd.s32 %s21, %s110
          %s115 = smul.addr %s114, 128
          %s116 = scalar_lea.hbm %s0, %s115
          %s118 = sshll.u32 %s109, 4
          %s119 = int_to_ptr.vmem [resolvable:$true] %s118
          %121 = dma.hbm_to_vmem [thread:$0]  %s116, 128, %s119, %s106
        $region20: #{tpu_custom_call.1} parent=15 // pred_fallthru
          _
      $region16: #{tpu_custom_call.1} parent=5 // pred_fallthru
        _
      %p122 = scmp.le.s32.totalorder 1, %s13
      %p123 = scmp.lt.s32.totalorder %s13, 3
      %p124 = pnand %p122, %p123
      %p125 = pneg %p124
      // Predicated region
      $region21: #{tpu_custom_call.1} parent=5 // pred_check
        _
      $region22: #{tpu_custom_call.1} parent=5 // pred_check_branch
        %127 = sbr.rel (%p124) target = $region24
      $region23: #{tpu_custom_call.1} parent=5 // pred_region
        %s128 = ssub.s32 %s13, 1
        %s129 = sand.u32 %s42, 1
        %s130 = scalar_lea.sflag [#allocation3], %s129
        %s131 = sand.u32 %s42, 1
        %s132 = smul.addr %s131, 8
        %s133 = scalar_lea.vmem [#allocation2], %s132
        // Predicated region
        $region25: #{tpu_custom_call.1} parent=23 // pred_check
          %p134 = pneg %p55
        $region26: #{tpu_custom_call.1} parent=23 // pred_check_branch
          %136 = sbr.rel (%p134) target = $region28
        $region27: #{tpu_custom_call.1} parent=23 // pred_region
          %137 = dma.done %s130, 128
        $region28: #{tpu_custom_call.1} parent=23 // pred_fallthru
          _
        %s138 = sand.u32 %s42, 1
        %s139 = scalar_lea.sflag [#allocation3], %s138
        %s140 = sand.u32 %s42, 1
        %s141 = smul.addr %s140, 8
        %s142 = scalar_lea.vmem [#allocation2], %s141
        %p143 = pneg %p55
        %p144 = pneg %p52
        %p145 = pneg %p83
        %p146 = pneg %p80
        %s147 = sand.u32 %s70, 1
        %s148 = scalar_lea.sflag [#allocation4], %s147
        %s149 = sand.u32 %s70, 1
        %s150 = smul.addr %s149, 8
        %s151 = scalar_lea.vmem [#allocation5], %s150
        %s152 = ssub.s32 1, %s22
        %v153 = vld [vmem:[%s133] sm:$0xff]
        %154 = vst [vmem:[%s151] sm:$0xff] %v153
        %s155 = sand.u32 %s70, 1
        %s156 = scalar_lea.sflag [#allocation4], %s155
        %s157 = sand.u32 %s70, 1
        %s158 = smul.addr %s157, 8
        %s159 = scalar_lea.vmem [#allocation5], %s158
        // Predicated region
        $region29: #{tpu_custom_call.1} parent=23 // pred_check
          %p160 = pneg %p80
        $region30: #{tpu_custom_call.1} parent=23 // pred_check_branch
          %162 = sbr.rel (%p160) target = $region32
        $region31: #{tpu_custom_call.1} parent=23 // pred_region
          %s164 = ssub.s32 128, 128
          %165 = vsyncadd %s156, %s164
          %s166 = sadd.s32 %s23, %s22
          %s167 = smul.addr %s166, 128
          %s168 = scalar_lea.hbm %s1, %s167
          %s170 = sshll.u32 %s159, 4
          %s171 = int_to_ptr.vmem [resolvable:$true] %s170
          %173 = dma.vmem_to_hbm [thread:$0]  %s171, 128, %s168, %s156
        $region32: #{tpu_custom_call.1} parent=23 // pred_fallthru
          _
      $region24: #{tpu_custom_call.1} parent=5 // pred_fallthru
        _
      %p174 = scmp.le.s32.totalorder 2, %s13
      // Predicated region
      $region33: #{tpu_custom_call.1} parent=5 // pred_check
        %p175 = pneg %p174
      $region34: #{tpu_custom_call.1} parent=5 // pred_check_branch
        %177 = sbr.rel (%p175) target = $region36
      $region35: #{tpu_custom_call.1} parent=5 // pred_region
        %s178 = ssub.s32 %s13, 2
        // Predicated region
        $region37: #{tpu_custom_call.1} parent=35 // pred_check
          %p179 = pneg %p86
        $region38: #{tpu_custom_call.1} parent=35 // pred_check_branch
          %181 = sbr.rel (%p179) target = $region40
        $region39: #{tpu_custom_call.1} parent=35 // pred_region
          %s182 = sand.u32 %s71, 1
          %s183 = scalar_lea.sflag [#allocation4], %s182
          %s184 = sand.u32 %s71, 1
          %s185 = smul.addr %s184, 8
          %s186 = scalar_lea.vmem [#allocation5], %s185
          %187 = dma.done %s183, 128
        $region40: #{tpu_custom_call.1} parent=35 // pred_fallthru
          _
      $region36: #{tpu_custom_call.1} parent=5 // pred_fallthru
        _
    $region6: #{tpu_custom_call.1} parent=1 // loop_footer
      %s17 = sadd.s32 1, %s13
    $region7: #{tpu_custom_call.1} parent=1 // loop_footer_branch
      %12 = sbr.rel target = $region3
    $region8: #{tpu_custom_call.1} parent=1 // loop_exit
      _
    %188 = vsyncpa [#allocation3], 1
    %s189 = scalar_lea.sflag [#allocation3], 1
    %190 = vsyncpa %s189, 1
    %191 = vsyncpa [#allocation4], 1
    %s192 = scalar_lea.sflag [#allocation4], 1
    %193 = vsyncpa %s192, 1

</llo_original>
